<compile_context>
chip_gen: v6e
topology: v6e:2x2x1
jax: 0.10.0
libtpu: 0.0.40
codegen_flags: <defaults>
</compile_context>

<pallas_src>
import functools

import jax
import jax.numpy as jnp
import numpy as np
from jax.experimental import pallas as pl
from jax.experimental.pallas import tpu as pltpu


def _pool_affine_kernel(x_ref, sel_ref, w_ref, b_ref, o_ref, *, half_w, presum):
    # x_ref  : (Mt, K)    packed input rows (g row-pairs per row, lane-dense)
    # sel_ref: (Ksel, N)  0/1 selection matrix (un-expanded when presum)
    # w_ref  : (Mt, 1)    per-row scale (already folded with 0.25)
    # b_ref  : (Mt, 1)    per-row bias
    # o_ref  : (Mt, N)    packed pooled output rows (lane-dense)
    xv = x_ref[...].astype(jnp.float32)
    if presum:
        # g == 1: vertical (row-pair) sum on the VPU; halves the matmul K dim.
        xs = xv[:, :half_w] + xv[:, half_w:]
    else:
        xs = xv  # small block-diagonal selector performs all 4 adds
    pooled = jnp.dot(xs, sel_ref[...],
                     precision=jax.lax.Precision.HIGHEST,
                     preferred_element_type=jnp.float32)       # (Mt, N)
    o_ref[...] = (pooled * w_ref[...] + b_ref[...]).astype(o_ref.dtype)


def _round_up(a, m):
    return ((a + m - 1) // m) * m


def _plan(B, C, H, W):
    """Shape-only planning (runs at trace time)."""
    if H % 2 or W % 2:
        raise ValueError("input spatial dims must be divisible by 2 for pooling.")
    OH, OW = H // 2, W // 2

    # packing factor g (divisor of OH -> one channel per packed row):
    #   g == 1 whenever a pooled row is already lane-dense; otherwise the
    #   smallest divisor reaching 128 lanes under tight caps.
    if OW >= 128:
        g = 1
    else:
        divs = [d for d in range(1, OH + 1)
                if OH % d == 0 and d * OW <= 256 and d * 2 * W <= 1024]
        lane_ok = [d for d in divs if d * OW >= 128]
        g = min(lane_ok) if lane_ok else max(divs)

    NG = (B * C * OH) // g          # rows of the packed 2-D view
    K = g * 2 * W                   # packed input row width (lanes)
    N = g * OW                      # packed output row width (lanes)
    presum = (g == 1)
    Ksel = W if presum else K

    # tiny 0/1 selection matrix (host-built; becomes a jit constant)
    kk = np.arange(Ksel)[:, None]
    nn = np.arange(N)[None, :]
    if presum:
        sel = (kk // 2) == nn
    else:
        sel = (((kk // (2 * W)) == (nn // OW))
               & (((kk % W) // 2) == (nn % OW)))
    sel = sel.astype(np.float32)

    # generation-aware row tiling
    try:
        kind = jax.devices()[0].device_kind.lower()
    except Exception:
        kind = ""
    is_v7 = ("v7" in kind) or ("7x" in kind)
    tile_bytes = (2 << 20) if is_v7 else (6 << 20)   # bigger tiles on v5e/v6e
    rows = max(8, tile_bytes // (K * 4))
    if rows < NG:
        align = 256 if rows >= 256 else 8
        Mt = max(8, (rows // align) * align)
    else:
        Mt = NG
    nsteps = pl.cdiv(NG, Mt)
    if is_v7 and nsteps > 1 and nsteps % 2 == 1:
        # even step count -> both v7x TensorCores stay busy on the parallel axis
        Mt = max(8, _round_up(pl.cdiv(NG, nsteps + 1), 8))
        nsteps = pl.cdiv(NG, Mt)
    vmem_limit = (40 << 20) if is_v7 else (64 << 20)

    return dict(OH=OH, OW=OW, g=g, NG=NG, K=K, N=N, Ksel=Ksel, Mt=Mt,
                nsteps=nsteps, presum=presum, sel=sel, vmem_limit=vmem_limit)


@jax.jit
def avg_pooling_layer(x, weight, bias):
    """x: (B, C, H, W); weight/bias: (C,) -> (B, C, H//2, W//2)."""
    B, C, H, W = x.shape
    assert weight.shape == (C,) and bias.shape == (C,)
    p = _plan(B, C, H, W)
    NG, K, N, Ksel, Mt = p["NG"], p["K"], p["N"], p["Ksel"], p["Mt"]

    x2 = x.reshape(NG, K)                               # metadata-only view
    # per packed-row channel -> (NG, 1) scale/bias; 0.25 folded into the scale
    chan = (jnp.arange(NG, dtype=jnp.int32) // (p["OH"] // p["g"])) % C
    w2 = jnp.take(weight.astype(jnp.float32) * 0.25, chan)[:, None]
    b2 = jnp.take(bias.astype(jnp.float32), chan)[:, None]
    sel = jnp.asarray(p["sel"])                         # jit compile-time constant

    kernel = functools.partial(_pool_affine_kernel, half_w=W, presum=p["presum"])
    out2 = pl.pallas_call(
        kernel,
        out_shape=jax.ShapeDtypeStruct((NG, N), x.dtype),
        grid=(p["nsteps"],),
        in_specs=[
            pl.BlockSpec((Mt, K), lambda i: (i, 0)),     # packed input rows
            pl.BlockSpec((Ksel, N), lambda i: (0, 0)),   # selection matrix (const)
            pl.BlockSpec((Mt, 1), lambda i: (i, 0)),     # per-row scale
            pl.BlockSpec((Mt, 1), lambda i: (i, 0)),     # per-row bias
        ],
        out_specs=pl.BlockSpec((Mt, N), lambda i: (i, 0)),
        compiler_params=pltpu.CompilerParams(
            dimension_semantics=("parallel",),
            vmem_limit_bytes=p["vmem_limit"],
        ),
        cost_estimate=pl.CostEstimate(
            flops=2 * NG * Ksel * N + NG * K,
            transcendentals=0,
            bytes_accessed=4 * (NG * K + NG * N + Ksel * N + 2 * NG),
        ),
    )(x2, sel, w2, b2)

    return out2.reshape(B, C, p["OH"], p["OW"])


def _reference(x, weight, bias):
    B, C, H, W = x.shape
    pooled = (x[:, :, 0::2, 0::2] + x[:, :, 1::2, 0::2]
              + x[:, :, 0::2, 1::2] + x[:, :, 1::2, 1::2]) * 0.25
    return weight[None, :, None, None] * pooled + bias[None, :, None, None]


if __name__ == "__main__":
    key = jax.random.PRNGKey(0)
    kx, kw, kb = jax.random.split(key, 3)
    B, C, S = 2, 4, 16
    x = jax.random.normal(kx, (B, C, S, S), dtype=jnp.float32)

    # 1) parameters exactly as the module's __init__ (ones / zeros)
    weight = jnp.ones((C,), jnp.float32)
    bias = jnp.zeros((C,), jnp.float32)
    out = jax.block_until_ready(avg_pooling_layer(x, weight, bias))
    assert out.shape == (B, C, S // 2, S // 2)
    np.testing.assert_allclose(np.asarray(out),
                               np.asarray(_reference(x, weight, bias)),
                               rtol=1e-5, atol=1e-5)

    # 2) non-trivial per-channel weight/bias to exercise the affine mapping
    weight2 = jax.random.normal(kw, (C,), dtype=jnp.float32)
    bias2 = jax.random.normal(kb, (C,), dtype=jnp.float32)
    out2 = jax.block_until_ready(avg_pooling_layer(x, weight2, bias2))
    np.testing.assert_allclose(np.asarray(out2),
                               np.asarray(_reference(x, weight2, bias2)),
                               rtol=1e-5, atol=1e-5)

    print("KERNEL_OK")
</pallas_src>

<mosaic_0001>
module attributes {stable_mosaic.version = 11 : i64} {
  func.func @_pool_affine_kernel(%arg0: i32, %arg1: memref<8x256xf32, #tpu.memory_space<vmem>>, %arg2: memref<256x64xf32, #tpu.memory_space<vmem>>, %arg3: memref<8x1xf32, #tpu.memory_space<vmem>>, %arg4: memref<8x1xf32, #tpu.memory_space<vmem>>, %arg5: memref<8x64xf32, #tpu.memory_space<vmem>>) attributes {dimension_semantics = [#tpu.dimension_semantics<parallel>], iteration_bounds = array<i64: 1>, scalar_prefetch = 0 : i64, scratch_operands = 0 : i64, tpu.core_type = #tpu.core_type<tc>, window_params = [{transform_indices = @transform_0, window_bounds = array<i64: 8, 256>}, {pipeline_mode = #tpu.pipeline_mode<synchronous>, transform_indices = @transform_1, window_bounds = array<i64: 256, 64>}, {transform_indices = @transform_2, window_bounds = array<i64: 8, 1>}, {transform_indices = @transform_3, window_bounds = array<i64: 8, 1>}, {transform_indices = @transform_4, window_bounds = array<i64: 8, 64>}]} {
    %c0 = arith.constant 0 : index
    %c0_0 = arith.constant 0 : index
    %0 = vector.load %arg1[%c0, %c0_0] : memref<8x256xf32, #tpu.memory_space<vmem>>, vector<8x256xf32>
    %c0_1 = arith.constant 0 : index
    %c0_2 = arith.constant 0 : index
    %1 = vector.load %arg2[%c0_1, %c0_2] : memref<256x64xf32, #tpu.memory_space<vmem>>, vector<256x64xf32>
    %cst = arith.constant dense<0.000000e+00> : vector<8x64xf32>
    %2 = tpu.matmul %0, %1, %cst {dimension_numbers = #tpu.dot_dimension_numbers<[1], [0], [0], [1], [0, 0, 1, 1], [], []>, precision = #tpu.contract_precision<fp32>} : vector<8x256xf32>, vector<256x64xf32>, vector<8x64xf32> -> vector<8x64xf32>
    %c0_3 = arith.constant 0 : index
    %c0_4 = arith.constant 0 : index
    %3 = vector.load %arg3[%c0_3, %c0_4] : memref<8x1xf32, #tpu.memory_space<vmem>>, vector<8x1xf32>
    %4 = vector.broadcast %3 : vector<8x1xf32> to vector<8x64xf32>
    %5 = arith.mulf %2, %4 : vector<8x64xf32>
    %c0_5 = arith.constant 0 : index
    %c0_6 = arith.constant 0 : index
    %6 = vector.load %arg4[%c0_5, %c0_6] : memref<8x1xf32, #tpu.memory_space<vmem>>, vector<8x1xf32>
    %7 = vector.broadcast %6 : vector<8x1xf32> to vector<8x64xf32>
    %8 = arith.addf %5, %7 : vector<8x64xf32>
    %c0_7 = arith.constant 0 : index
    %c0_8 = arith.constant 0 : index
    %9 = vector.load %arg5[%c0_7, %c0_8] : memref<8x64xf32, #tpu.memory_space<vmem>>, vector<8x64xf32>
    tpu.vector_store %arg5[%c0_7, %c0_8], %8 {strides = array<i32>} : memref<8x64xf32, #tpu.memory_space<vmem>>, vector<8x64xf32>,
    return
  }
  func.func @transform_0(%arg0: i32) -> (i32, i32) {
    %c0_i32 = arith.constant 0 : i32
    %c0_i32_0 = arith.constant 0 : i32
    return %arg0, %c0_i32 : i32, i32
  }
  func.func @transform_1(%arg0: i32) -> (i32, i32) {
    %c0_i32 = arith.constant 0 : i32
    %c0_i32_0 = arith.constant 0 : i32
    %c0_i32_1 = arith.constant 0 : i32
    return %c0_i32, %c0_i32_0 : i32, i32
  }
  func.func @transform_2(%arg0: i32) -> (i32, i32) {
    %c0_i32 = arith.constant 0 : i32
    %c0_i32_0 = arith.constant 0 : i32
    return %arg0, %c0_i32 : i32, i32
  }
  func.func @transform_3(%arg0: i32) -> (i32, i32) {
    %c0_i32 = arith.constant 0 : i32
    %c0_i32_0 = arith.constant 0 : i32
    return %arg0, %c0_i32 : i32, i32
  }
  func.func @transform_4(%arg0: i32) -> (i32, i32) {
    %c0_i32 = arith.constant 0 : i32
    %c0_i32_0 = arith.constant 0 : i32
    return %arg0, %c0_i32 : i32, i32
  }
}

</mosaic_0001>

<llo_original>
// kernel: avg_pooling_layer.1
$region0: #{avg_pooling_layer.1}
  #allocation0 [shape = 'u32[]', space=smem, size = 0x4, offset = 0x4, fixed_abs, tag = 'smem constant byte address 0x4 - core index']
  #allocation1 [shape = 'u32[144,128]{1,0:T(1,128)}', space=vmem, size = 0x12000, scoped, tag = 'internal scratch']
  %s0 = inlined_call_operand.vmem [shape: f32[8,256], index: 0, kind: input, shape index: {}]
  %s1 = inlined_call_operand.vmem [shape: f32[256,64], index: 1, kind: input, shape index: {}]
  %s2 = inlined_call_operand.vmem [shape: f32[8,1], index: 2, kind: input, shape index: {}]
  %s3 = inlined_call_operand.vmem [shape: f32[8,1], index: 3, kind: input, shape index: {}]
  %s4 = inlined_call_operand.vmem [shape: f32[8,64], index: 4, kind: output, shape index: {}]
  %s5 = sld [smem:[#allocation0]]
  $region26: #{avg_pooling_layer.1} parent=0
    _
  %s7 = ssub.s32 1, %s5
  %s8 = scalar_select 0, %s7, %s5
  // Predicated region
  $region2: #{avg_pooling_layer.1} parent=0 // pred_check
    _
  $region3: #{avg_pooling_layer.1} parent=0 // pred_check_branch
    %10 = sbr.rel (0) target = $region5
  $region4: #{avg_pooling_layer.1} parent=0 // pred_region
    _
  $region5: #{avg_pooling_layer.1} parent=0 // pred_fallthru
    _
  // Predicated region
  $region6: #{avg_pooling_layer.1} parent=0 // pred_check
    _
  $region7: #{avg_pooling_layer.1} parent=0 // pred_check_branch
    %12 = sbr.rel (0) target = $region9
  $region8: #{avg_pooling_layer.1} parent=0 // pred_region
    _
  $region9: #{avg_pooling_layer.1} parent=0 // pred_fallthru
    _
  // Predicated region
  $region10: #{avg_pooling_layer.1} parent=0 // pred_check
    _
  $region11: #{avg_pooling_layer.1} parent=0 // pred_check_branch
    %14 = sbr.rel (0) target = $region13
  $region12: #{avg_pooling_layer.1} parent=0 // pred_region
    _
  $region13: #{avg_pooling_layer.1} parent=0 // pred_fallthru
    _
  // Predicated region
  $region14: #{avg_pooling_layer.1} parent=0 // pred_check
    _
  $region15: #{avg_pooling_layer.1} parent=0 // pred_check_branch
    %16 = sbr.rel (0) target = $region17
  $region16: #{avg_pooling_layer.1} parent=0 // pred_region
    _
  $region17: #{avg_pooling_layer.1} parent=0 // pred_fallthru
    _
  %v17 = vld [vmem:[%s0] sm:$0xff]
  %v18 = vld [vmem:[%s0 + $0x8] sm:$0xff]
  %v19 = vld [vmem:[%s1] sm:$0xff]
  %v20 = vld [vmem:[%s1 + $0x8] sm:$0xff]
  %v21 = vld [vmem:[%s1 + $0x10] sm:$0xff]
  %v22 = vld [vmem:[%s1 + $0x18] sm:$0xff]
  %v23 = vld [vmem:[%s1 + $0x20] sm:$0xff]
  %v24 = vld [vmem:[%s1 + $0x28] sm:$0xff]
  %v25 = vld [vmem:[%s1 + $0x30] sm:$0xff]
  %v26 = vld [vmem:[%s1 + $0x38] sm:$0xff]
  %v27 = vld [vmem:[%s1 + $0x40] sm:$0xff]
  %v28 = vld [vmem:[%s1 + $0x48] sm:$0xff]
  %v29 = vld [vmem:[%s1 + $0x50] sm:$0xff]
  %v30 = vld [vmem:[%s1 + $0x58] sm:$0xff]
  %v31 = vld [vmem:[%s1 + $0x60] sm:$0xff]
  %v32 = vld [vmem:[%s1 + $0x68] sm:$0xff]
  %v33 = vld [vmem:[%s1 + $0x70] sm:$0xff]
  %v34 = vld [vmem:[%s1 + $0x78] sm:$0xff]
  %v35 = vld [vmem:[%s1 + $0x80] sm:$0xff]
  %v36 = vld [vmem:[%s1 + $0x88] sm:$0xff]
  %v37 = vld [vmem:[%s1 + $0x90] sm:$0xff]
  %v38 = vld [vmem:[%s1 + $0x98] sm:$0xff]
  %v39 = vld [vmem:[%s1 + $0xa0] sm:$0xff]
  %v40 = vld [vmem:[%s1 + $0xa8] sm:$0xff]
  %v41 = vld [vmem:[%s1 + $0xb0] sm:$0xff]
  %v42 = vld [vmem:[%s1 + $0xb8] sm:$0xff]
  %v43 = vld [vmem:[%s1 + $0xc0] sm:$0xff]
  %v44 = vld [vmem:[%s1 + $0xc8] sm:$0xff]
  %v45 = vld [vmem:[%s1 + $0xd0] sm:$0xff]
  %v46 = vld [vmem:[%s1 + $0xd8] sm:$0xff]
  %v47 = vld [vmem:[%s1 + $0xe0] sm:$0xff]
  %v48 = vld [vmem:[%s1 + $0xe8] sm:$0xff]
  %v49 = vld [vmem:[%s1 + $0xf0] sm:$0xff]
  %v50 = vld [vmem:[%s1 + $0xf8] sm:$0xff]
  %51 = vmatprep.subr.mxu0 0.0
  %v52 = vand.u32 %v34, 4294901760
  %53 = vmatpush1.msra.mxu0 %v52
  %54 = vmatprep.subr.mxu0 0.0
  %v55 = vand.u32 %v33, 4294901760
  %56 = vmatpush1.msra.mxu0 %v55
  %57 = vmatprep.subr.mxu0 0.0
  %v58 = vand.u32 %v32, 4294901760
  %59 = vmatpush1.msra.mxu0 %v58
  %60 = vmatprep.subr.mxu0 0.0
  %v61 = vand.u32 %v31, 4294901760
  %62 = vmatpush1.msra.mxu0 %v61
  %63 = vmatprep.subr.mxu0 0.0
  %v64 = vand.u32 %v30, 4294901760
  %65 = vmatpush1.msra.mxu0 %v64
  %66 = vmatprep.subr.mxu0 0.0
  %v67 = vand.u32 %v29, 4294901760
  %68 = vmatpush1.msra.mxu0 %v67
  %69 = vmatprep.subr.mxu0 0.0
  %v70 = vand.u32 %v28, 4294901760
  %71 = vmatpush1.msra.mxu0 %v70
  %72 = vmatprep.subr.mxu0 0.0
  %v73 = vand.u32 %v27, 4294901760
  %74 = vmatpush1.msra.mxu0 %v73
  %75 = vmatprep.subr.mxu0 0.0
  %v76 = vand.u32 %v26, 4294901760
  %77 = vmatpush1.msra.mxu0 %v76
  %78 = vmatprep.subr.mxu0 0.0
  %v79 = vand.u32 %v25, 4294901760
  %80 = vmatpush1.msra.mxu0 %v79
  %81 = vmatprep.subr.mxu0 0.0
  %v82 = vand.u32 %v24, 4294901760
  %83 = vmatpush1.msra.mxu0 %v82
  %84 = vmatprep.subr.mxu0 0.0
  %v85 = vand.u32 %v23, 4294901760
  %86 = vmatpush1.msra.mxu0 %v85
  %87 = vmatprep.subr.mxu0 0.0
  %v88 = vand.u32 %v22, 4294901760
  %89 = vmatpush1.msra.mxu0 %v88
  %90 = vmatprep.subr.mxu0 0.0
  %v91 = vand.u32 %v21, 4294901760
  %92 = vmatpush1.msra.mxu0 %v91
  %93 = vmatprep.subr.mxu0 0.0
  %v94 = vand.u32 %v20, 4294901760
  %95 = vmatpush1.msra.mxu0 %v94
  %96 = vmatprep.subr.mxu0 0.0
  %v97 = vand.u32 %v19, 4294901760
  %98 = vmatpush1.msra.mxu0 %v97
  %99 = vmatprep.subr.mxu0 0.0
  %v100 = vand.u32 %v50, 4294901760
  %101 = vmatpush2.msra.mxu0 %v100
  %102 = vmatprep.subr.mxu0 0.0
  %v103 = vand.u32 %v49, 4294901760
  %104 = vmatpush2.msra.mxu0 %v103
  %105 = vmatprep.subr.mxu0 0.0
  %v106 = vand.u32 %v48, 4294901760
  %107 = vmatpush2.msra.mxu0 %v106
  %108 = vmatprep.subr.mxu0 0.0
  %v109 = vand.u32 %v47, 4294901760
  %110 = vmatpush2.msra.mxu0 %v109
  %111 = vmatprep.subr.mxu0 0.0
  %v112 = vand.u32 %v46, 4294901760
  %113 = vmatpush2.msra.mxu0 %v112
  %114 = vmatprep.subr.mxu0 0.0
  %v115 = vand.u32 %v45, 4294901760
  %116 = vmatpush2.msra.mxu0 %v115
  %117 = vmatprep.subr.mxu0 0.0
  %v118 = vand.u32 %v44, 4294901760
  %119 = vmatpush2.msra.mxu0 %v118
  %120 = vmatprep.subr.mxu0 0.0
  %v121 = vand.u32 %v43, 4294901760
  %122 = vmatpush2.msra.mxu0 %v121
  %123 = vmatprep.subr.mxu0 0.0
  %v124 = vand.u32 %v42, 4294901760
  %125 = vmatpush2.msra.mxu0 %v124
  %126 = vmatprep.subr.mxu0 0.0
  %v127 = vand.u32 %v41, 4294901760
  %128 = vmatpush2.msra.mxu0 %v127
  %129 = vmatprep.subr.mxu0 0.0
  %v130 = vand.u32 %v40, 4294901760
  %131 = vmatpush2.msra.mxu0 %v130
  %132 = vmatprep.subr.mxu0 0.0
  %v133 = vand.u32 %v39, 4294901760
  %134 = vmatpush2.msra.mxu0 %v133
  %135 = vmatprep.subr.mxu0 0.0
  %v136 = vand.u32 %v38, 4294901760
  %137 = vmatpush2.msra.mxu0 %v136
  %138 = vmatprep.subr.mxu0 0.0
  %v139 = vand.u32 %v37, 4294901760
  %140 = vmatpush2.msra.mxu0 %v139
  %141 = vmatprep.subr.mxu0 0.0
  %v142 = vand.u32 %v36, 4294901760
  %143 = vmatpush2.msra.mxu0 %v142
  %144 = vmatprep.subr.mxu0 0.0
  %v145 = vand.u32 %v35, 4294901760
  %146 = vmatpush2.msra.mxu0 %v145
  %v147 = vand.u32 %v18, 4294901760
  %v148 = vsub.f32 %v18, %v147
  %v149 = vand.u32 %v148, 4294901760
  %v150 = vsub.f32 %v148, %v149
  %v151 = vand.u32 %v150, 4294901760
  %152 = vmatprep.mubr.f32.mxu0 %v151
  %v153 = vand.u32 %v17, 4294901760
  %v154 = vsub.f32 %v17, %v153
  %v155 = vand.u32 %v154, 4294901760
  %v156 = vsub.f32 %v154, %v155
  %v157 = vand.u32 %v156, 4294901760
  %158 = vmatmul.mubr.f32.gmra.mxu0 %v157
  %v159 = vpop.f32.mrf.mxu0
  %v160 = vadd.f32 0.0, %v159
  %v161 = vpop.f32.mrf.mxu0
  %162 = vdwg.mxu0
  %163 = vmatprep.subr.mxu0 0.0
  %v164 = vand.u32 %v34, 4294901760
  %v165 = vsub.f32 %v34, %v164
  %v166 = vand.u32 %v165, 4294901760
  %v167 = vsub.f32 %v165, %v166
  %v168 = vand.u32 %v167, 4294901760
  %169 = vmatpush1.msra.mxu0 %v168
  %170 = vmatprep.subr.mxu0 0.0
  %v171 = vand.u32 %v33, 4294901760
  %v172 = vsub.f32 %v33, %v171
  %v173 = vand.u32 %v172, 4294901760
  %v174 = vsub.f32 %v172, %v173
  %v175 = vand.u32 %v174, 4294901760
  %176 = vmatpush1.msra.mxu0 %v175
  %177 = vmatprep.subr.mxu0 0.0
  %v178 = vand.u32 %v32, 4294901760
  %v179 = vsub.f32 %v32, %v178
  %v180 = vand.u32 %v179, 4294901760
  %v181 = vsub.f32 %v179, %v180
  %v182 = vand.u32 %v181, 4294901760
  %183 = vmatpush1.msra.mxu0 %v182
  %184 = vmatprep.subr.mxu0 0.0
  %v185 = vand.u32 %v31, 4294901760
  %v186 = vsub.f32 %v31, %v185
  %v187 = vand.u32 %v186, 4294901760
  %v188 = vsub.f32 %v186, %v187
  %v189 = vand.u32 %v188, 4294901760
  %190 = vmatpush1.msra.mxu0 %v189
  %191 = vmatprep.subr.mxu0 0.0
  %v192 = vand.u32 %v30, 4294901760
  %v193 = vsub.f32 %v30, %v192
  %v194 = vand.u32 %v193, 4294901760
  %v195 = vsub.f32 %v193, %v194
  %v196 = vand.u32 %v195, 4294901760
  %197 = vmatpush1.msra.mxu0 %v196
  %198 = vmatprep.subr.mxu0 0.0
  %v199 = vand.u32 %v29, 4294901760
  %v200 = vsub.f32 %v29, %v199
  %v201 = vand.u32 %v200, 4294901760
  %v202 = vsub.f32 %v200, %v201
  %v203 = vand.u32 %v202, 4294901760
  %204 = vmatpush1.msra.mxu0 %v203
  %205 = vmatprep.subr.mxu0 0.0
  %v206 = vand.u32 %v28, 4294901760
  %v207 = vsub.f32 %v28, %v206
  %v208 = vand.u32 %v207, 4294901760
  %v209 = vsub.f32 %v207, %v208
  %v210 = vand.u32 %v209, 4294901760
  %211 = vmatpush1.msra.mxu0 %v210
  %212 = vmatprep.subr.mxu0 0.0
  %v213 = vand.u32 %v27, 4294901760
  %v214 = vsub.f32 %v27, %v213
  %v215 = vand.u32 %v214, 4294901760
  %v216 = vsub.f32 %v214, %v215
  %v217 = vand.u32 %v216, 4294901760
  %218 = vmatpush1.msra.mxu0 %v217
  %219 = vmatprep.subr.mxu0 0.0
  %v220 = vand.u32 %v26, 4294901760
  %v221 = vsub.f32 %v26, %v220
  %v222 = vand.u32 %v221, 4294901760
  %v223 = vsub.f32 %v221, %v222
  %v224 = vand.u32 %v223, 4294901760
  %225 = vmatpush1.msra.mxu0 %v224
  %226 = vmatprep.subr.mxu0 0.0
  %v227 = vand.u32 %v25, 4294901760
  %v228 = vsub.f32 %v25, %v227
  %v229 = vand.u32 %v228, 4294901760
  %v230 = vsub.f32 %v228, %v229
  %v231 = vand.u32 %v230, 4294901760
  %232 = vmatpush1.msra.mxu0 %v231
  %233 = vmatprep.subr.mxu0 0.0
  %v234 = vand.u32 %v24, 4294901760
  %v235 = vsub.f32 %v24, %v234
  %v236 = vand.u32 %v235, 4294901760
  %v237 = vsub.f32 %v235, %v236
  %v238 = vand.u32 %v237, 4294901760
  %239 = vmatpush1.msra.mxu0 %v238
  %240 = vmatprep.subr.mxu0 0.0
  %v241 = vand.u32 %v23, 4294901760
  %v242 = vsub.f32 %v23, %v241
  %v243 = vand.u32 %v242, 4294901760
  %v244 = vsub.f32 %v242, %v243
  %v245 = vand.u32 %v244, 4294901760
  %246 = vmatpush1.msra.mxu0 %v245
  %247 = vmatprep.subr.mxu0 0.0
  %v248 = vand.u32 %v22, 4294901760
  %v249 = vsub.f32 %v22, %v248
  %v250 = vand.u32 %v249, 4294901760
  %v251 = vsub.f32 %v249, %v250
  %v252 = vand.u32 %v251, 4294901760
  %253 = vmatpush1.msra.mxu0 %v252
  %254 = vmatprep.subr.mxu0 0.0
  %v255 = vand.u32 %v21, 4294901760
  %v256 = vsub.f32 %v21, %v255
  %v257 = vand.u32 %v256, 4294901760
  %v258 = vsub.f32 %v256, %v257
  %v259 = vand.u32 %v258, 4294901760
  %260 = vmatpush1.msra.mxu0 %v259
  %261 = vmatprep.subr.mxu0 0.0
  %v262 = vand.u32 %v20, 4294901760
  %v263 = vsub.f32 %v20, %v262
  %v264 = vand.u32 %v263, 4294901760
  %v265 = vsub.f32 %v263, %v264
  %v266 = vand.u32 %v265, 4294901760
  %267 = vmatpush1.msra.mxu0 %v266
  %268 = vmatprep.subr.mxu0 0.0
  %v269 = vand.u32 %v19, 4294901760
  %v270 = vsub.f32 %v19, %v269
  %v271 = vand.u32 %v270, 4294901760
  %v272 = vsub.f32 %v270, %v271
  %v273 = vand.u32 %v272, 4294901760
  %274 = vmatpush1.msra.mxu0 %v273
  %275 = vmatprep.subr.mxu0 0.0
  %v276 = vand.u32 %v50, 4294901760
  %v277 = vsub.f32 %v50, %v276
  %v278 = vand.u32 %v277, 4294901760
  %v279 = vsub.f32 %v277, %v278
  %v280 = vand.u32 %v279, 4294901760
  %281 = vmatpush2.msra.mxu0 %v280
  %282 = vmatprep.subr.mxu0 0.0
  %v283 = vand.u32 %v49, 4294901760
  %v284 = vsub.f32 %v49, %v283
  %v285 = vand.u32 %v284, 4294901760
  %v286 = vsub.f32 %v284, %v285
  %v287 = vand.u32 %v286, 4294901760
  %288 = vmatpush2.msra.mxu0 %v287
  %289 = vmatprep.subr.mxu0 0.0
  %v290 = vand.u32 %v48, 4294901760
  %v291 = vsub.f32 %v48, %v290
  %v292 = vand.u32 %v291, 4294901760
  %v293 = vsub.f32 %v291, %v292
  %v294 = vand.u32 %v293, 4294901760
  %295 = vmatpush2.msra.mxu0 %v294
  %296 = vmatprep.subr.mxu0 0.0
  %v297 = vand.u32 %v47, 4294901760
  %v298 = vsub.f32 %v47, %v297
  %v299 = vand.u32 %v298, 4294901760
  %v300 = vsub.f32 %v298, %v299
  %v301 = vand.u32 %v300, 4294901760
  %302 = vmatpush2.msra.mxu0 %v301
  %303 = vmatprep.subr.mxu0 0.0
  %v304 = vand.u32 %v46, 4294901760
  %v305 = vsub.f32 %v46, %v304
  %v306 = vand.u32 %v305, 4294901760
  %v307 = vsub.f32 %v305, %v306
  %v308 = vand.u32 %v307, 4294901760
  %309 = vmatpush2.msra.mxu0 %v308
  %310 = vmatprep.subr.mxu0 0.0
  %v311 = vand.u32 %v45, 4294901760
  %v312 = vsub.f32 %v45, %v311
  %v313 = vand.u32 %v312, 4294901760
  %v314 = vsub.f32 %v312, %v313
  %v315 = vand.u32 %v314, 4294901760
  %316 = vmatpush2.msra.mxu0 %v315
  %317 = vmatprep.subr.mxu0 0.0
  %v318 = vand.u32 %v44, 4294901760
  %v319 = vsub.f32 %v44, %v318
  %v320 = vand.u32 %v319, 4294901760
  %v321 = vsub.f32 %v319, %v320
  %v322 = vand.u32 %v321, 4294901760
  %323 = vmatpush2.msra.mxu0 %v322
  %324 = vmatprep.subr.mxu0 0.0
  %v325 = vand.u32 %v43, 4294901760
  %v326 = vsub.f32 %v43, %v325
  %v327 = vand.u32 %v326, 4294901760
  %v328 = vsub.f32 %v326, %v327
  %v329 = vand.u32 %v328, 4294901760
  %330 = vmatpush2.msra.mxu0 %v329
  %331 = vmatprep.subr.mxu0 0.0
  %v332 = vand.u32 %v42, 4294901760
  %v333 = vsub.f32 %v42, %v332
  %v334 = vand.u32 %v333, 4294901760
  %v335 = vsub.f32 %v333, %v334
  %v336 = vand.u32 %v335, 4294901760
  %337 = vmatpush2.msra.mxu0 %v336
  %338 = vmatprep.subr.mxu0 0.0
  %v339 = vand.u32 %v41, 4294901760
  %v340 = vsub.f32 %v41, %v339
  %v341 = vand.u32 %v340, 4294901760
  %v342 = vsub.f32 %v340, %v341
  %v343 = vand.u32 %v342, 4294901760
  %344 = vmatpush2.msra.mxu0 %v343
  %345 = vmatprep.subr.mxu0 0.0
  %v346 = vand.u32 %v40, 4294901760
  %v347 = vsub.f32 %v40, %v346
  %v348 = vand.u32 %v347, 4294901760
  %v349 = vsub.f32 %v347, %v348
  %v350 = vand.u32 %v349, 4294901760
  %351 = vmatpush2.msra.mxu0 %v350
  %352 = vmatprep.subr.mxu0 0.0
  %v353 = vand.u32 %v39, 4294901760
  %v354 = vsub.f32 %v39, %v353
  %v355 = vand.u32 %v354, 4294901760
  %v356 = vsub.f32 %v354, %v355
  %v357 = vand.u32 %v356, 4294901760
  %358 = vmatpush2.msra.mxu0 %v357
  %359 = vmatprep.subr.mxu0 0.0
  %v360 = vand.u32 %v38, 4294901760
  %v361 = vsub.f32 %v38, %v360
  %v362 = vand.u32 %v361, 4294901760
  %v363 = vsub.f32 %v361, %v362
  %v364 = vand.u32 %v363, 4294901760
  %365 = vmatpush2.msra.mxu0 %v364
  %366 = vmatprep.subr.mxu0 0.0
  %v367 = vand.u32 %v37, 4294901760
  %v368 = vsub.f32 %v37, %v367
  %v369 = vand.u32 %v368, 4294901760
  %v370 = vsub.f32 %v368, %v369
  %v371 = vand.u32 %v370, 4294901760
  %372 = vmatpush2.msra.mxu0 %v371
  %373 = vmatprep.subr.mxu0 0.0
  %v374 = vand.u32 %v36, 4294901760
  %v375 = vsub.f32 %v36, %v374
  %v376 = vand.u32 %v375, 4294901760
  %v377 = vsub.f32 %v375, %v376
  %v378 = vand.u32 %v377, 4294901760
  %379 = vmatpush2.msra.mxu0 %v378
  %380 = vmatprep.subr.mxu0 0.0
  %v381 = vand.u32 %v35, 4294901760
  %v382 = vsub.f32 %v35, %v381
  %v383 = vand.u32 %v382, 4294901760
  %v384 = vsub.f32 %v382, %v383
  %v385 = vand.u32 %v384, 4294901760
  %386 = vmatpush2.msra.mxu0 %v385
  %v387 = vand.u32 %v18, 4294901760
  %388 = vmatprep.mubr.f32.mxu0 %v387
  %v389 = vand.u32 %v17, 4294901760
  %390 = vmatmul.mubr.f32.gmra.mxu0 %v389
  %v391 = vpop.f32.mrf.mxu0
  %v392 = vadd.f32 %v160, %v391
  %v393 = vpop.f32.mrf.mxu0
  %394 = vdwg.mxu0
  %395 = vmatprep.subr.mxu0 0.0
  %v396 = vand.u32 %v34, 4294901760
  %v397 = vsub.f32 %v34, %v396
  %398 = vmatpush1.msra.mxu0 %v397
  %399 = vmatprep.subr.mxu0 0.0
  %v400 = vand.u32 %v33, 4294901760
  %v401 = vsub.f32 %v33, %v400
  %402 = vmatpush1.msra.mxu0 %v401
  %403 = vmatprep.subr.mxu0 0.0
  %v404 = vand.u32 %v32, 4294901760
  %v405 = vsub.f32 %v32, %v404
  %406 = vmatpush1.msra.mxu0 %v405
  %407 = vmatprep.subr.mxu0 0.0
  %v408 = vand.u32 %v31, 4294901760
  %v409 = vsub.f32 %v31, %v408
  %410 = vmatpush1.msra.mxu0 %v409
  %411 = vmatprep.subr.mxu0 0.0
  %v412 = vand.u32 %v30, 4294901760
  %v413 = vsub.f32 %v30, %v412
  %414 = vmatpush1.msra.mxu0 %v413
  %415 = vmatprep.subr.mxu0 0.0
  %v416 = vand.u32 %v29, 4294901760
  %v417 = vsub.f32 %v29, %v416
  %418 = vmatpush1.msra.mxu0 %v417
  %419 = vmatprep.subr.mxu0 0.0
  %v420 = vand.u32 %v28, 4294901760
  %v421 = vsub.f32 %v28, %v420
  %422 = vmatpush1.msra.mxu0 %v421
  %423 = vmatprep.subr.mxu0 0.0
  %v424 = vand.u32 %v27, 4294901760
  %v425 = vsub.f32 %v27, %v424
  %426 = vmatpush1.msra.mxu0 %v425
  %427 = vmatprep.subr.mxu0 0.0
  %v428 = vand.u32 %v26, 4294901760
  %v429 = vsub.f32 %v26, %v428
  %430 = vmatpush1.msra.mxu0 %v429
  %431 = vmatprep.subr.mxu0 0.0
  %v432 = vand.u32 %v25, 4294901760
  %v433 = vsub.f32 %v25, %v432
  %434 = vmatpush1.msra.mxu0 %v433
  %435 = vmatprep.subr.mxu0 0.0
  %v436 = vand.u32 %v24, 4294901760
  %v437 = vsub.f32 %v24, %v436
  %438 = vmatpush1.msra.mxu0 %v437
  %439 = vmatprep.subr.mxu0 0.0
  %v440 = vand.u32 %v23, 4294901760
  %v441 = vsub.f32 %v23, %v440
  %442 = vmatpush1.msra.mxu0 %v441
  %443 = vmatprep.subr.mxu0 0.0
  %v444 = vand.u32 %v22, 4294901760
  %v445 = vsub.f32 %v22, %v444
  %446 = vmatpush1.msra.mxu0 %v445
  %447 = vmatprep.subr.mxu0 0.0
  %v448 = vand.u32 %v21, 4294901760
  %v449 = vsub.f32 %v21, %v448
  %450 = vmatpush1.msra.mxu0 %v449
  %451 = vmatprep.subr.mxu0 0.0
  %v452 = vand.u32 %v20, 4294901760
  %v453 = vsub.f32 %v20, %v452
  %454 = vmatpush1.msra.mxu0 %v453
  %455 = vmatprep.subr.mxu0 0.0
  %v456 = vand.u32 %v19, 4294901760
  %v457 = vsub.f32 %v19, %v456
  %458 = vmatpush1.msra.mxu0 %v457
  %459 = vmatprep.subr.mxu0 0.0
  %v460 = vand.u32 %v50, 4294901760
  %v461 = vsub.f32 %v50, %v460
  %462 = vmatpush2.msra.mxu0 %v461
  %463 = vmatprep.subr.mxu0 0.0
  %v464 = vand.u32 %v49, 4294901760
  %v465 = vsub.f32 %v49, %v464
  %466 = vmatpush2.msra.mxu0 %v465
  %467 = vmatprep.subr.mxu0 0.0
  %v468 = vand.u32 %v48, 4294901760
  %v469 = vsub.f32 %v48, %v468
  %470 = vmatpush2.msra.mxu0 %v469
  %471 = vmatprep.subr.mxu0 0.0
  %v472 = vand.u32 %v47, 4294901760
  %v473 = vsub.f32 %v47, %v472
  %474 = vmatpush2.msra.mxu0 %v473
  %475 = vmatprep.subr.mxu0 0.0
  %v476 = vand.u32 %v46, 4294901760
  %v477 = vsub.f32 %v46, %v476
  %478 = vmatpush2.msra.mxu0 %v477
  %479 = vmatprep.subr.mxu0 0.0
  %v480 = vand.u32 %v45, 4294901760
  %v481 = vsub.f32 %v45, %v480
  %482 = vmatpush2.msra.mxu0 %v481
  %483 = vmatprep.subr.mxu0 0.0
  %v484 = vand.u32 %v44, 4294901760
  %v485 = vsub.f32 %v44, %v484
  %486 = vmatpush2.msra.mxu0 %v485
  %487 = vmatprep.subr.mxu0 0.0
  %v488 = vand.u32 %v43, 4294901760
  %v489 = vsub.f32 %v43, %v488
  %490 = vmatpush2.msra.mxu0 %v489
  %491 = vmatprep.subr.mxu0 0.0
  %v492 = vand.u32 %v42, 4294901760
  %v493 = vsub.f32 %v42, %v492
  %494 = vmatpush2.msra.mxu0 %v493
  %495 = vmatprep.subr.mxu0 0.0
  %v496 = vand.u32 %v41, 4294901760
  %v497 = vsub.f32 %v41, %v496
  %498 = vmatpush2.msra.mxu0 %v497
  %499 = vmatprep.subr.mxu0 0.0
  %v500 = vand.u32 %v40, 4294901760
  %v501 = vsub.f32 %v40, %v500
  %502 = vmatpush2.msra.mxu0 %v501
  %503 = vmatprep.subr.mxu0 0.0
  %v504 = vand.u32 %v39, 4294901760
  %v505 = vsub.f32 %v39, %v504
  %506 = vmatpush2.msra.mxu0 %v505
  %507 = vmatprep.subr.mxu0 0.0
  %v508 = vand.u32 %v38, 4294901760
  %v509 = vsub.f32 %v38, %v508
  %510 = vmatpush2.msra.mxu0 %v509
  %511 = vmatprep.subr.mxu0 0.0
  %v512 = vand.u32 %v37, 4294901760
  %v513 = vsub.f32 %v37, %v512
  %514 = vmatpush2.msra.mxu0 %v513
  %515 = vmatprep.subr.mxu0 0.0
  %v516 = vand.u32 %v36, 4294901760
  %v517 = vsub.f32 %v36, %v516
  %518 = vmatpush2.msra.mxu0 %v517
  %519 = vmatprep.subr.mxu0 0.0
  %v520 = vand.u32 %v35, 4294901760
  %v521 = vsub.f32 %v35, %v520
  %522 = vmatpush2.msra.mxu0 %v521
  %v523 = vand.u32 %v18, 4294901760
  %v524 = vsub.f32 %v18, %v523
  %525 = vmatprep.mubr.f32.mxu0 %v524
  %v526 = vand.u32 %v17, 4294901760
  %v527 = vsub.f32 %v17, %v526
  %528 = vmatmul.mubr.f32.gmra.mxu0 %v527
  %v529 = vpop.f32.mrf.mxu0
  %v530 = vadd.f32 %v392, %v529
  %v531 = vpop.f32.mrf.mxu0
  %532 = vdwg.mxu0
  %533 = vmatprep.subr.mxu0 0.0
  %v534 = vand.u32 %v34, 4294901760
  %535 = vmatpush1.msra.mxu0 %v534
  %536 = vmatprep.subr.mxu0 0.0
  %v537 = vand.u32 %v33, 4294901760
  %538 = vmatpush1.msra.mxu0 %v537
  %539 = vmatprep.subr.mxu0 0.0
  %v540 = vand.u32 %v32, 4294901760
  %541 = vmatpush1.msra.mxu0 %v540
  %542 = vmatprep.subr.mxu0 0.0
  %v543 = vand.u32 %v31, 4294901760
  %544 = vmatpush1.msra.mxu0 %v543
  %545 = vmatprep.subr.mxu0 0.0
  %v546 = vand.u32 %v30, 4294901760
  %547 = vmatpush1.msra.mxu0 %v546
  %548 = vmatprep.subr.mxu0 0.0
  %v549 = vand.u32 %v29, 4294901760
  %550 = vmatpush1.msra.mxu0 %v549
  %551 = vmatprep.subr.mxu0 0.0
  %v552 = vand.u32 %v28, 4294901760
  %553 = vmatpush1.msra.mxu0 %v552
  %554 = vmatprep.subr.mxu0 0.0
  %v555 = vand.u32 %v27, 4294901760
  %556 = vmatpush1.msra.mxu0 %v555
  %557 = vmatprep.subr.mxu0 0.0
  %v558 = vand.u32 %v26, 4294901760
  %559 = vmatpush1.msra.mxu0 %v558
  %560 = vmatprep.subr.mxu0 0.0
  %v561 = vand.u32 %v25, 4294901760
  %562 = vmatpush1.msra.mxu0 %v561
  %563 = vmatprep.subr.mxu0 0.0
  %v564 = vand.u32 %v24, 4294901760
  %565 = vmatpush1.msra.mxu0 %v564
  %566 = vmatprep.subr.mxu0 0.0
  %v567 = vand.u32 %v23, 4294901760
  %568 = vmatpush1.msra.mxu0 %v567
  %569 = vmatprep.subr.mxu0 0.0
  %v570 = vand.u32 %v22, 4294901760
  %571 = vmatpush1.msra.mxu0 %v570
  %572 = vmatprep.subr.mxu0 0.0
  %v573 = vand.u32 %v21, 4294901760
  %574 = vmatpush1.msra.mxu0 %v573
  %575 = vmatprep.subr.mxu0 0.0
  %v576 = vand.u32 %v20, 4294901760
  %577 = vmatpush1.msra.mxu0 %v576
  %578 = vmatprep.subr.mxu0 0.0
  %v579 = vand.u32 %v19, 4294901760
  %580 = vmatpush1.msra.mxu0 %v579
  %581 = vmatprep.subr.mxu0 0.0
  %v582 = vand.u32 %v50, 4294901760
  %583 = vmatpush2.msra.mxu0 %v582
  %584 = vmatprep.subr.mxu0 0.0
  %v585 = vand.u32 %v49, 4294901760
  %586 = vmatpush2.msra.mxu0 %v585
  %587 = vmatprep.subr.mxu0 0.0
  %v588 = vand.u32 %v48, 4294901760
  %589 = vmatpush2.msra.mxu0 %v588
  %590 = vmatprep.subr.mxu0 0.0
  %v591 = vand.u32 %v47, 4294901760
  %592 = vmatpush2.msra.mxu0 %v591
  %593 = vmatprep.subr.mxu0 0.0
  %v594 = vand.u32 %v46, 4294901760
  %595 = vmatpush2.msra.mxu0 %v594
  %596 = vmatprep.subr.mxu0 0.0
  %v597 = vand.u32 %v45, 4294901760
  %598 = vmatpush2.msra.mxu0 %v597
  %599 = vmatprep.subr.mxu0 0.0
  %v600 = vand.u32 %v44, 4294901760
  %601 = vmatpush2.msra.mxu0 %v600
  %602 = vmatprep.subr.mxu0 0.0
  %v603 = vand.u32 %v43, 4294901760
  %604 = vmatpush2.msra.mxu0 %v603
  %605 = vmatprep.subr.mxu0 0.0
  %v606 = vand.u32 %v42, 4294901760
  %607 = vmatpush2.msra.mxu0 %v606
  %608 = vmatprep.subr.mxu0 0.0
  %v609 = vand.u32 %v41, 4294901760
  %610 = vmatpush2.msra.mxu0 %v609
  %611 = vmatprep.subr.mxu0 0.0
  %v612 = vand.u32 %v40, 4294901760
  %613 = vmatpush2.msra.mxu0 %v612
  %614 = vmatprep.subr.mxu0 0.0
  %v615 = vand.u32 %v39, 4294901760
  %616 = vmatpush2.msra.mxu0 %v615
  %617 = vmatprep.subr.mxu0 0.0
  %v618 = vand.u32 %v38, 4294901760
  %619 = vmatpush2.msra.mxu0 %v618
  %620 = vmatprep.subr.mxu0 0.0
  %v621 = vand.u32 %v37, 4294901760
  %622 = vmatpush2.msra.mxu0 %v621
  %623 = vmatprep.subr.mxu0 0.0
  %v624 = vand.u32 %v36, 4294901760
  %625 = vmatpush2.msra.mxu0 %v624
  %626 = vmatprep.subr.mxu0 0.0
  %v627 = vand.u32 %v35, 4294901760
  %628 = vmatpush2.msra.mxu0 %v627
  %v629 = vand.u32 %v18, 4294901760
  %v630 = vsub.f32 %v18, %v629
  %v631 = vand.u32 %v630, 4294901760
  %632 = vmatprep.mubr.f32.mxu0 %v631
  %v633 = vand.u32 %v17, 4294901760
  %v634 = vsub.f32 %v17, %v633
  %v635 = vand.u32 %v634, 4294901760
  %636 = vmatmul.mubr.f32.gmra.mxu0 %v635
  %v637 = vpop.f32.mrf.mxu0
  %v638 = vadd.f32 %v530, %v637
  %v639 = vpop.f32.mrf.mxu0
  %640 = vdwg.mxu0
  %641 = vmatprep.subr.mxu0 0.0
  %v642 = vand.u32 %v34, 4294901760
  %v643 = vsub.f32 %v34, %v642
  %v644 = vand.u32 %v643, 4294901760
  %645 = vmatpush1.msra.mxu0 %v644
  %646 = vmatprep.subr.mxu0 0.0
  %v647 = vand.u32 %v33, 4294901760
  %v648 = vsub.f32 %v33, %v647
  %v649 = vand.u32 %v648, 4294901760
  %650 = vmatpush1.msra.mxu0 %v649
  %651 = vmatprep.subr.mxu0 0.0
  %v652 = vand.u32 %v32, 4294901760
  %v653 = vsub.f32 %v32, %v652
  %v654 = vand.u32 %v653, 4294901760
  %655 = vmatpush1.msra.mxu0 %v654
  %656 = vmatprep.subr.mxu0 0.0
  %v657 = vand.u32 %v31, 4294901760
  %v658 = vsub.f32 %v31, %v657
  %v659 = vand.u32 %v658, 4294901760
  %660 = vmatpush1.msra.mxu0 %v659
  %661 = vmatprep.subr.mxu0 0.0
  %v662 = vand.u32 %v30, 4294901760
  %v663 = vsub.f32 %v30, %v662
  %v664 = vand.u32 %v663, 4294901760
  %665 = vmatpush1.msra.mxu0 %v664
  %666 = vmatprep.subr.mxu0 0.0
  %v667 = vand.u32 %v29, 4294901760
  %v668 = vsub.f32 %v29, %v667
  %v669 = vand.u32 %v668, 4294901760
  %670 = vmatpush1.msra.mxu0 %v669
  %671 = vmatprep.subr.mxu0 0.0
  %v672 = vand.u32 %v28, 4294901760
  %v673 = vsub.f32 %v28, %v672
  %v674 = vand.u32 %v673, 4294901760
  %675 = vmatpush1.msra.mxu0 %v674
  %676 = vmatprep.subr.mxu0 0.0
  %v677 = vand.u32 %v27, 4294901760
  %v678 = vsub.f32 %v27, %v677
  %v679 = vand.u32 %v678, 4294901760
  %680 = vmatpush1.msra.mxu0 %v679
  %681 = vmatprep.subr.mxu0 0.0
  %v682 = vand.u32 %v26, 4294901760
  %v683 = vsub.f32 %v26, %v682
  %v684 = vand.u32 %v683, 4294901760
  %685 = vmatpush1.msra.mxu0 %v684
  %686 = vmatprep.subr.mxu0 0.0
  %v687 = vand.u32 %v25, 4294901760
  %v688 = vsub.f32 %v25, %v687
  %v689 = vand.u32 %v688, 4294901760
  %690 = vmatpush1.msra.mxu0 %v689
  %691 = vmatprep.subr.mxu0 0.0
  %v692 = vand.u32 %v24, 4294901760
  %v693 = vsub.f32 %v24, %v692
  %v694 = vand.u32 %v693, 4294901760
  %695 = vmatpush1.msra.mxu0 %v694
  %696 = vmatprep.subr.mxu0 0.0
  %v697 = vand.u32 %v23, 4294901760
  %v698 = vsub.f32 %v23, %v697
  %v699 = vand.u32 %v698, 4294901760
  %700 = vmatpush1.msra.mxu0 %v699
  %701 = vmatprep.subr.mxu0 0.0
  %v702 = vand.u32 %v22, 4294901760
  %v703 = vsub.f32 %v22, %v702
  %v704 = vand.u32 %v703, 4294901760
  %705 = vmatpush1.msra.mxu0 %v704
  %706 = vmatprep.subr.mxu0 0.0
  %v707 = vand.u32 %v21, 4294901760
  %v708 = vsub.f32 %v21, %v707
  %v709 = vand.u32 %v708, 4294901760
  %710 = vmatpush1.msra.mxu0 %v709
  %711 = vmatprep.subr.mxu0 0.0
  %v712 = vand.u32 %v20, 4294901760
  %v713 = vsub.f32 %v20, %v712
  %v714 = vand.u32 %v713, 4294901760
  %715 = vmatpush1.msra.mxu0 %v714
  %716 = vmatprep.subr.mxu0 0.0
  %v717 = vand.u32 %v19, 4294901760
  %v718 = vsub.f32 %v19, %v717
  %v719 = vand.u32 %v718, 4294901760
  %720 = vmatpush1.msra.mxu0 %v719
  %721 = vmatprep.subr.mxu0 0.0
  %v722 = vand.u32 %v50, 4294901760
  %v723 = vsub.f32 %v50, %v722
  %v724 = vand.u32 %v723, 4294901760
  %725 = vmatpush2.msra.mxu0 %v724
  %726 = vmatprep.subr.mxu0 0.0
  %v727 = vand.u32 %v49, 4294901760
  %v728 = vsub.f32 %v49, %v727
  %v729 = vand.u32 %v728, 4294901760
  %730 = vmatpush2.msra.mxu0 %v729
  %731 = vmatprep.subr.mxu0 0.0
  %v732 = vand.u32 %v48, 4294901760
  %v733 = vsub.f32 %v48, %v732
  %v734 = vand.u32 %v733, 4294901760
  %735 = vmatpush2.msra.mxu0 %v734
  %736 = vmatprep.subr.mxu0 0.0
  %v737 = vand.u32 %v47, 4294901760
  %v738 = vsub.f32 %v47, %v737
  %v739 = vand.u32 %v738, 4294901760
  %740 = vmatpush2.msra.mxu0 %v739
  %741 = vmatprep.subr.mxu0 0.0
  %v742 = vand.u32 %v46, 4294901760
  %v743 = vsub.f32 %v46, %v742
  %v744 = vand.u32 %v743, 4294901760
  %745 = vmatpush2.msra.mxu0 %v744
  %746 = vmatprep.subr.mxu0 0.0
  %v747 = vand.u32 %v45, 4294901760
  %v748 = vsub.f32 %v45, %v747
  %v749 = vand.u32 %v748, 4294901760
  %750 = vmatpush2.msra.mxu0 %v749
  %751 = vmatprep.subr.mxu0 0.0
  %v752 = vand.u32 %v44, 4294901760
  %v753 = vsub.f32 %v44, %v752
  %v754 = vand.u32 %v753, 4294901760
  %755 = vmatpush2.msra.mxu0 %v754
  %756 = vmatprep.subr.mxu0 0.0
  %v757 = vand.u32 %v43, 4294901760
  %v758 = vsub.f32 %v43, %v757
  %v759 = vand.u32 %v758, 4294901760
  %760 = vmatpush2.msra.mxu0 %v759
  %761 = vmatprep.subr.mxu0 0.0
  %v762 = vand.u32 %v42, 4294901760
  %v763 = vsub.f32 %v42, %v762
  %v764 = vand.u32 %v763, 4294901760
  %765 = vmatpush2.msra.mxu0 %v764
  %766 = vmatprep.subr.mxu0 0.0
  %v767 = vand.u32 %v41, 4294901760
  %v768 = vsub.f32 %v41, %v767
  %v769 = vand.u32 %v768, 4294901760
  %770 = vmatpush2.msra.mxu0 %v769
  %771 = vmatprep.subr.mxu0 0.0
  %v772 = vand.u32 %v40, 4294901760
  %v773 = vsub.f32 %v40, %v772
  %v774 = vand.u32 %v773, 4294901760
  %775 = vmatpush2.msra.mxu0 %v774
  %776 = vmatprep.subr.mxu0 0.0
  %v777 = vand.u32 %v39, 4294901760
  %v778 = vsub.f32 %v39, %v777
  %v779 = vand.u32 %v778, 4294901760
  %780 = vmatpush2.msra.mxu0 %v779
  %781 = vmatprep.subr.mxu0 0.0
  %v782 = vand.u32 %v38, 4294901760
  %v783 = vsub.f32 %v38, %v782
  %v784 = vand.u32 %v783, 4294901760
  %785 = vmatpush2.msra.mxu0 %v784
  %786 = vmatprep.subr.mxu0 0.0
  %v787 = vand.u32 %v37, 4294901760
  %v788 = vsub.f32 %v37, %v787
  %v789 = vand.u32 %v788, 4294901760
  %790 = vmatpush2.msra.mxu0 %v789
  %791 = vmatprep.subr.mxu0 0.0
  %v792 = vand.u32 %v36, 4294901760
  %v793 = vsub.f32 %v36, %v792
  %v794 = vand.u32 %v793, 4294901760
  %795 = vmatpush2.msra.mxu0 %v794
  %796 = vmatprep.subr.mxu0 0.0
  %v797 = vand.u32 %v35, 4294901760
  %v798 = vsub.f32 %v35, %v797
  %v799 = vand.u32 %v798, 4294901760
  %800 = vmatpush2.msra.mxu0 %v799
  %v801 = vand.u32 %v18, 4294901760
  %802 = vmatprep.mubr.f32.mxu0 %v801
  %v803 = vand.u32 %v17, 4294901760
  %804 = vmatmul.mubr.f32.gmra.mxu0 %v803
  %v805 = vpop.f32.mrf.mxu0
  %v806 = vadd.f32 %v638, %v805
  %v807 = vpop.f32.mrf.mxu0
  %808 = vdwg.mxu0
  %809 = vmatprep.subr.mxu0 0.0
  %v810 = vand.u32 %v34, 4294901760
  %811 = vmatpush1.msra.mxu0 %v810
  %812 = vmatprep.subr.mxu0 0.0
  %v813 = vand.u32 %v33, 4294901760
  %814 = vmatpush1.msra.mxu0 %v813
  %815 = vmatprep.subr.mxu0 0.0
  %v816 = vand.u32 %v32, 4294901760
  %817 = vmatpush1.msra.mxu0 %v816
  %818 = vmatprep.subr.mxu0 0.0
  %v819 = vand.u32 %v31, 4294901760
  %820 = vmatpush1.msra.mxu0 %v819
  %821 = vmatprep.subr.mxu0 0.0
  %v822 = vand.u32 %v30, 4294901760
  %823 = vmatpush1.msra.mxu0 %v822
  %824 = vmatprep.subr.mxu0 0.0
  %v825 = vand.u32 %v29, 4294901760
  %826 = vmatpush1.msra.mxu0 %v825
  %827 = vmatprep.subr.mxu0 0.0
  %v828 = vand.u32 %v28, 4294901760
  %829 = vmatpush1.msra.mxu0 %v828
  %830 = vmatprep.subr.mxu0 0.0
  %v831 = vand.u32 %v27, 4294901760
  %832 = vmatpush1.msra.mxu0 %v831
  %833 = vmatprep.subr.mxu0 0.0
  %v834 = vand.u32 %v26, 4294901760
  %835 = vmatpush1.msra.mxu0 %v834
  %836 = vmatprep.subr.mxu0 0.0
  %v837 = vand.u32 %v25, 4294901760
  %838 = vmatpush1.msra.mxu0 %v837
  %839 = vmatprep.subr.mxu0 0.0
  %v840 = vand.u32 %v24, 4294901760
  %841 = vmatpush1.msra.mxu0 %v840
  %842 = vmatprep.subr.mxu0 0.0
  %v843 = vand.u32 %v23, 4294901760
  %844 = vmatpush1.msra.mxu0 %v843
  %845 = vmatprep.subr.mxu0 0.0
  %v846 = vand.u32 %v22, 4294901760
  %847 = vmatpush1.msra.mxu0 %v846
  %848 = vmatprep.subr.mxu0 0.0
  %v849 = vand.u32 %v21, 4294901760
  %850 = vmatpush1.msra.mxu0 %v849
  %851 = vmatprep.subr.mxu0 0.0
  %v852 = vand.u32 %v20, 4294901760
  %853 = vmatpush1.msra.mxu0 %v852
  %854 = vmatprep.subr.mxu0 0.0
  %v855 = vand.u32 %v19, 4294901760
  %856 = vmatpush1.msra.mxu0 %v855
  %857 = vmatprep.subr.mxu0 0.0
  %v858 = vand.u32 %v50, 4294901760
  %859 = vmatpush2.msra.mxu0 %v858
  %860 = vmatprep.subr.mxu0 0.0
  %v861 = vand.u32 %v49, 4294901760
  %862 = vmatpush2.msra.mxu0 %v861
  %863 = vmatprep.subr.mxu0 0.0
  %v864 = vand.u32 %v48, 4294901760
  %865 = vmatpush2.msra.mxu0 %v864
  %866 = vmatprep.subr.mxu0 0.0
  %v867 = vand.u32 %v47, 4294901760
  %868 = vmatpush2.msra.mxu0 %v867
  %869 = vmatprep.subr.mxu0 0.0
  %v870 = vand.u32 %v46, 4294901760
  %871 = vmatpush2.msra.mxu0 %v870
  %872 = vmatprep.subr.mxu0 0.0
  %v873 = vand.u32 %v45, 4294901760
  %874 = vmatpush2.msra.mxu0 %v873
  %875 = vmatprep.subr.mxu0 0.0
  %v876 = vand.u32 %v44, 4294901760
  %877 = vmatpush2.msra.mxu0 %v876
  %878 = vmatprep.subr.mxu0 0.0
  %v879 = vand.u32 %v43, 4294901760
  %880 = vmatpush2.msra.mxu0 %v879
  %881 = vmatprep.subr.mxu0 0.0
  %v882 = vand.u32 %v42, 4294901760
  %883 = vmatpush2.msra.mxu0 %v882
  %884 = vmatprep.subr.mxu0 0.0
  %v885 = vand.u32 %v41, 4294901760
  %886 = vmatpush2.msra.mxu0 %v885
  %887 = vmatprep.subr.mxu0 0.0
  %v888 = vand.u32 %v40, 4294901760
  %889 = vmatpush2.msra.mxu0 %v888
  %890 = vmatprep.subr.mxu0 0.0
  %v891 = vand.u32 %v39, 4294901760
  %892 = vmatpush2.msra.mxu0 %v891
  %893 = vmatprep.subr.mxu0 0.0
  %v894 = vand.u32 %v38, 4294901760
  %895 = vmatpush2.msra.mxu0 %v894
  %896 = vmatprep.subr.mxu0 0.0
  %v897 = vand.u32 %v37, 4294901760
  %898 = vmatpush2.msra.mxu0 %v897
  %899 = vmatprep.subr.mxu0 0.0
  %v900 = vand.u32 %v36, 4294901760
  %901 = vmatpush2.msra.mxu0 %v900
  %902 = vmatprep.subr.mxu0 0.0
  %v903 = vand.u32 %v35, 4294901760
  %904 = vmatpush2.msra.mxu0 %v903
  %v905 = vand.u32 %v18, 4294901760
  %906 = vmatprep.mubr.f32.mxu0 %v905
  %v907 = vand.u32 %v17, 4294901760
  %908 = vmatmul.mubr.f32.gmra.mxu0 %v907
  %v909 = vpop.f32.mrf.mxu0
  %v910 = vadd.f32 %v806, %v909
  %v911 = vpop.f32.mrf.mxu0
  %912 = vdwg.mxu0
  %v913 = vld [vmem:[%s2] sm:$0xff]
  %915 = vset.pattern.permute.xlu0 0
  %916 = vperm.xlu0 %915, %v913
  %v917 = vpop.permute.xlu0 %916
  %v919 = vmul.f32 %v910, %v917
  %v920 = vld [vmem:[%s3] sm:$0xff]
  %922 = vset.pattern.permute.xlu0 0
  %923 = vperm.xlu0 %922, %v920
  %v924 = vpop.permute.xlu0 %923
  %v926 = vadd.f32 %v919, %v924
  %vm927 = vcmask 523264
  %928 = vst.msk [vmem:[%s4] sm:$0xff] %vm927, %v926
  // Predicated region
  $region18: #{avg_pooling_layer.1} parent=0 // pred_check
    _
  $region19: #{avg_pooling_layer.1} parent=0 // pred_check_branch
    %930 = sbr.rel (0) target = $region21
  $region20: #{avg_pooling_layer.1} parent=0 // pred_region
    _
  $region21: #{avg_pooling_layer.1} parent=0 // pred_fallthru
    _
  // Predicated region
  $region22: #{avg_pooling_layer.1} parent=0 // pred_check
    _
  $region23: #{avg_pooling_layer.1} parent=0 // pred_check_branch
    %932 = sbr.rel (0) target = $region25
  $region24: #{avg_pooling_layer.1} parent=0 // pred_region
    _
  $region25: #{avg_pooling_layer.1} parent=0 // pred_fallthru
    _

</llo_original>
